<compile_context>
chip_gen: v5e
topology: v5e:2x2
jax: 0.10.0
libtpu: 0.0.40
codegen_flags: <defaults>
</compile_context>

<pallas_src>
import functools

import jax
import jax.numpy as jnp
from jax.experimental import pallas as pl
from jax.experimental.pallas import tpu as pltpu


def _vmem_limit_bytes():
    # v5e/v6e have 128 MiB physical VMEM (scoped default only 16/32 MiB) -> raise to 96 MiB.
    # v7x has 64 MiB physical -> cap at ~48 MiB so double-buffered blocks still fit.
    try:
        cap = int(pltpu.get_tpu_info().vmem_capacity_bytes)
    except Exception:
        cap = 64 * 1024 * 1024
    return int(min(96 * 1024 * 1024, (cap * 3) // 4))


# ---------------------------------------------------------------------------
# Fused kernel (packed lane-dense layout): depth-loss partial sums + depth2normal
# ---------------------------------------------------------------------------
def _fused_kernel(W, f_ref, d_ref, g_ref, m_ref, n_ref, abs_ref, msum_ref):
    d = d_ref[...]                               # (Bt, H, kW)
    g = g_ref[...]
    m = m_ref[...].astype(jnp.float32)           # cast in-kernel (mask may be bool/int8/f32)
    Bt, H, kW = d.shape

    # ---- depth-loss partial sums (single fused read of depth / gt / mask) ----
    diff = jnp.abs((d - g) * m)
    abs_ref[...] = jnp.sum(diff, axis=(0, 1, 2), keepdims=True)
    msum_ref[...] = jnp.sum(m, axis=(0, 1, 2), keepdims=True)

    # ---- depth2normal on the masked depth ----
    dm = d * m
    dsafe = jnp.where(dm > 0.0, dm, jnp.float32(1e-5))   # depth>0 ? depth : 1e-5

    # Hoisted border masks (computed once, reused by both Sobel stages).
    row = jax.lax.broadcasted_iota(jnp.int32, (Bt, H, kW), 1)
    col = jax.lax.broadcasted_iota(jnp.int32, (Bt, H, kW), 2) % W   # per-image column
    top, bot = row == 0, row == H - 1
    lft, rgt = col == 0, col == W - 1
    zero = jnp.float32(0.0)

    def up(x):      # x[i-1, j], zero-padded at i == 0
        return jnp.where(top, zero, pltpu.roll(x, shift=1, axis=1))

    def down(x):    # x[i+1, j], zero-padded at i == H-1
        return jnp.where(bot, zero, pltpu.roll(x, shift=H - 1, axis=1))

    def left(x):    # x[i, j-1], zero-padded at j == 0 (also zeroes packed-image seams)
        return jnp.where(lft, zero, pltpu.roll(x, shift=1, axis=2))

    def right(x):   # x[i, j+1], zero-padded at j == W-1
        return jnp.where(rgt, zero, pltpu.roll(x, shift=kW - 1, axis=2))

    # Separable 3x3 Sobel (cross-correlation, zero padding); 1/8 is folded into fx/fy.
    v = up(dsafe) + 2.0 * dsafe + down(dsafe)    # vertical   [1,2,1] smoothing
    h = left(dsafe) + 2.0 * dsafe + right(dsafe)  # horizontal [1,2,1] smoothing
    gx = left(v) - right(v)
    gy = up(h) - down(h)

    f = f_ref[...]                               # (Bt, 2, kW): 0.125*fx / 0.125*fy per lane
    fx = f[:, 0:1, :]
    fy = f[:, 1:2, :]

    inv_d = pl.reciprocal(dsafe, approx=True)    # single EUP vrcp (idle slot), reused twice
    nx = gx * fx * inv_d
    ny = gy * fy * inv_d

    # torch.where(|v| == 0, 1e-5, v).
    # TODO(synk): isnan/isinf guards of the reference are dropped (inputs assumed finite).
    nx = jnp.where(nx == zero, jnp.float32(1e-5), nx)
    ny = jnp.where(ny == zero, jnp.float32(1e-5), ny)

    # F.normalize(dim=1) with nz == 1  =>  norm >= 1, so the eps clamp is a no-op.
    inv_norm = jax.lax.rsqrt(nx * nx + ny * ny + 1.0)
    n_ref[:, 0, :, :] = nx * inv_norm
    n_ref[:, 1, :, :] = ny * inv_norm
    n_ref[:, 2, :, :] = inv_norm                 # nz == 1 before normalization


# ---------------------------------------------------------------------------
# Fast path: depth-loss only (normals are dead code in the reference forward)
# ---------------------------------------------------------------------------
def _loss_only_kernel(d_ref, g_ref, m_ref, abs_ref, msum_ref):
    m = m_ref[...].astype(jnp.float32)
    diff = jnp.abs((d_ref[...] - g_ref[...]) * m)
    abs_ref[...] = jnp.sum(diff, axis=(0, 1, 2), keepdims=True)
    msum_ref[...] = jnp.sum(m, axis=(0, 1, 2), keepdims=True)


# ---------------------------------------------------------------------------
# Forward wrapper (mirrors NormalLoss.forward; the reference returns depth_loss only)
# ---------------------------------------------------------------------------
def normal_loss_forward(depth, gt_depth, nmap, mask, roi_cams, *, compute_normals=True):
    del nmap  # TODO(synk): normal_loss = loss_func(norm_from_depth[g_mask], nmap[g_mask])
    # is computed but never returned by the reference forward; the boolean-mask gather
    # has a data-dependent shape and is omitted (returned value is unaffected).

    B, _, H, W = depth.shape
    d = depth.reshape(B, H, W)                   # free reshape of contiguous NCHW
    g = gt_depth.reshape(B, H, W)
    m = mask                                     # native dtype; cast to f32 inside kernel

    vmem_limit = _vmem_limit_bytes()
    sum_spec = lambda: pl.BlockSpec((1, 1, 1), lambda i: (i, 0, 0))
    cparams = pltpu.CompilerParams(
        dimension_semantics=("parallel",),       # megacore across the batch grid
        vmem_limit_bytes=vmem_limit,
    )

    # ---------------- depth-loss-only fast path ----------------
    if not compute_normals:
        bt = max(1, (768 * 1024) // max(1, 3 * H * W * 4))
        if B >= 2:
            bt = min(bt, pl.cdiv(B, 2))          # keep >= 2 grid steps (v7x: 2 TCs)
        bt = min(bt, B)
        n_steps = pl.cdiv(B, bt)
        Bp = n_steps * bt
        pad3 = ((0, Bp - B), (0, 0), (0, 0))     # zero-padded items contribute 0 to sums
        dp, gp, mp = jnp.pad(d, pad3), jnp.pad(g, pad3), jnp.pad(m, pad3)
        spat = pl.BlockSpec((bt, H, W), lambda i: (i, 0, 0))

        abs_part, msk_part = pl.pallas_call(
            _loss_only_kernel,
            out_shape=(jax.ShapeDtypeStruct((n_steps, 1, 1), jnp.float32),
                       jax.ShapeDtypeStruct((n_steps, 1, 1), jnp.float32)),
            grid=(n_steps,),
            in_specs=[spat, spat, spat],
            out_specs=[sum_spec(), sum_spec()],
            compiler_params=cparams,
        )(dp, gp, mp)

        mean_abs = jnp.sum(abs_part) / jnp.float32(B * H * W)
        depth_loss = mean_abs / jnp.maximum(jnp.sum(msk_part), 1.0)
        return depth_loss, None

    # ---------------- fused path (packed, lane-dense layout) ----------------
    k = 128 // W if (W < 128 and 128 % W == 0) else 1   # images packed along lanes
    kW = k * W
    Bg_raw = pl.cdiv(B, k)
    bt = max(1, (768 * 1024) // max(1, 3 * H * kW * 4))  # ~0.75 MB input per step
    if Bg_raw >= 2:
        bt = min(bt, pl.cdiv(Bg_raw, 2))         # keep >= 2 grid steps (v7x: 2 TCs)
    bt = min(bt, Bg_raw)
    n_steps = pl.cdiv(Bg_raw, bt)
    Bg = n_steps * bt                            # packed groups (batch-padded)
    Bp = Bg * k                                  # padded image count

    pad3 = ((0, Bp - B), (0, 0), (0, 0))         # zero-padded images: mask=0 -> sums +0
    dp, gp, mp = jnp.pad(d, pad3), jnp.pad(g, pad3), jnp.pad(m, pad3)

    def pack(x):                                 # (Bp, H, W) -> (Bg, H, k*W)
        return x.reshape(Bg, k, H, W).transpose(0, 2, 1, 3).reshape(Bg, H, kW)

    dk, gk, mk = pack(dp), pack(gp), pack(mp)

    # 1/8 Sobel scale folded into fx/fy; tiny per-lane map (Bg, 2, kW).
    fx = jnp.pad(roi_cams[:, 0, 0].astype(jnp.float32), (0, Bp - B), constant_values=1.0)
    fy = jnp.pad(roi_cams[:, 1, 1].astype(jnp.float32), (0, Bp - B), constant_values=1.0)
    fmap = jnp.stack(
        [jnp.repeat(0.125 * fx.reshape(Bg, k), W, axis=1),
         jnp.repeat(0.125 * fy.reshape(Bg, k), W, axis=1)], axis=1)   # (Bg, 2, kW)

    spat = pl.BlockSpec((bt, H, kW), lambda i: (i, 0, 0))
    f_spec = pl.BlockSpec((bt, 2, kW), lambda i: (i, 0, 0))
    n_spec = pl.BlockSpec((bt, 3, H, kW), lambda i: (i, 0, 0, 0))

    normals_k, abs_part, msk_part = pl.pallas_call(
        functools.partial(_fused_kernel, W),
        out_shape=(jax.ShapeDtypeStruct((Bg, 3, H, kW), jnp.float32),
                   jax.ShapeDtypeStruct((n_steps, 1, 1), jnp.float32),
                   jax.ShapeDtypeStruct((n_steps, 1, 1), jnp.float32)),
        grid=(n_steps,),
        in_specs=[f_spec, spat, spat, spat],
        out_specs=[n_spec, sum_spec(), sum_spec()],
        compiler_params=cparams,
    )(fmap, dk, gk, mk)

    # Tiny O(n_steps) epilogue (keeps the batch grid axis "parallel").
    mean_abs = jnp.sum(abs_part) / jnp.float32(B * H * W)          # reduction='mean'
    depth_loss = mean_abs / jnp.maximum(jnp.sum(msk_part), 1.0)    # / clamp(mask.sum(), 1)

    # Unpack the lane-packed normals back to (B, 3, H, W).
    normals = (normals_k.reshape(Bg, 3, H, k, W)
               .transpose(0, 3, 1, 2, 4)
               .reshape(Bp, 3, H, W)[:B])
    return depth_loss, normals


# ---------------------------------------------------------------------------
# Pure-JAX reference of depth2normal (direct conv form) for the sanity check
# ---------------------------------------------------------------------------
def _depth2normal_ref(masked_depth, roi_cams):
    B, _, H, W = masked_depth.shape
    d = masked_depth[:, 0]
    d = jnp.where(d > 0, d, jnp.float32(1e-5))
    dp = jnp.pad(d, ((0, 0), (1, 1), (1, 1)))
    tl = dp[:, 0:H, 0:W]; tc = dp[:, 0:H, 1:W + 1]; tr = dp[:, 0:H, 2:W + 2]
    ml = dp[:, 1:H + 1, 0:W]; mr = dp[:, 1:H + 1, 2:W + 2]
    bl = dp[:, 2:H + 2, 0:W]; bc = dp[:, 2:H + 2, 1:W + 1]; br = dp[:, 2:H + 2, 2:W + 2]
    gx = 0.125 * tl - 0.125 * tr + 0.25 * ml - 0.25 * mr + 0.125 * bl - 0.125 * br
    gy = 0.125 * tl + 0.25 * tc + 0.125 * tr - 0.125 * bl - 0.25 * bc - 0.125 * br
    fx = roi_cams[:, 0, 0][:, None, None]
    fy = roi_cams[:, 1, 1][:, None, None]
    nx = gx * fx / d
    ny = gy * fy / d
    nz = jnp.ones_like(d)
    fix = lambda v: jnp.where(jnp.abs(v) == 0, jnp.float32(1e-5), v)
    n = jnp.stack([fix(nx), fix(ny), nz], axis=1)
    return n / jnp.sqrt(jnp.sum(n * n, axis=1, keepdims=True))


if __name__ == "__main__":
    key = jax.random.PRNGKey(0)
    B, H, W = 2, 16, 16
    k1, k2, k3, k4 = jax.random.split(key, 4)
    depth = jax.random.uniform(k1, (B, 1, H, W), jnp.float32, 0.1, 2.0)
    gt_depth = jax.random.uniform(k2, (B, 1, H, W), jnp.float32, 0.1, 2.0)
    nmap = jax.random.normal(k3, (B, 3, H, W), dtype=jnp.float32)
    mask = (jax.random.uniform(k4, (B, H, W)) > 0.5).astype(jnp.float32)

    # deterministic camera intrinsics (fx, fy on the diagonal)
    roi_cams = jnp.zeros((B, 3, 3), jnp.float32)
    roi_cams = roi_cams.at[:, 0, 0].set(jnp.array([320.0, 280.0]))
    roi_cams = roi_cams.at[:, 1, 1].set(jnp.array([320.0, 300.0]))
    roi_cams = roi_cams.at[:, 0, 2].set(64.0)
    roi_cams = roi_cams.at[:, 1, 2].set(64.0)
    roi_cams = roi_cams.at[:, 2, 2].set(1.0)

    depth_loss, normals = normal_loss_forward(depth, gt_depth, nmap, mask, roi_cams)
    jax.block_until_ready((depth_loss, normals))

    # fast path (normals gated off) must give the identical depth loss
    depth_loss_fast, _ = normal_loss_forward(depth, gt_depth, nmap, mask, roi_cams,
                                             compute_normals=False)
    jax.block_until_ready(depth_loss_fast)

    # ---- sanity checks against pure-JAX references ----
    mask_e = mask[:, None]
    ref_loss = jnp.mean(jnp.abs((depth - gt_depth) * mask_e)) / jnp.maximum(jnp.sum(mask_e), 1.0)
    assert jnp.allclose(depth_loss, ref_loss, rtol=1e-5, atol=1e-6), (depth_loss, ref_loss)
    assert jnp.allclose(depth_loss_fast, ref_loss, rtol=1e-5, atol=1e-6), (depth_loss_fast, ref_loss)

    ref_normals = _depth2normal_ref(depth * mask_e, roi_cams)
    assert bool(jnp.all(jnp.isfinite(normals)))
    # approx=True EUP reciprocal contributes ~1e-4..1e-3 deviation vs the exact-divide ref
    assert jnp.allclose(normals, ref_normals, rtol=5e-3, atol=5e-3), float(
        jnp.max(jnp.abs(normals - ref_normals)))

    print("KERNEL_OK")
</pallas_src>

<mosaic_0001>
module attributes {stable_mosaic.version = 11 : i64} {
  func.func @_fused_kernel(%arg0: i32, %arg1: memref<1x2x128xf32, #tpu.memory_space<vmem>>, %arg2: memref<1x16x128xf32, #tpu.memory_space<vmem>>, %arg3: memref<1x16x128xf32, #tpu.memory_space<vmem>>, %arg4: memref<1x16x128xf32, #tpu.memory_space<vmem>>, %arg5: memref<1x3x16x128xf32, #tpu.memory_space<vmem>>, %arg6: memref<1x1x1xf32, #tpu.memory_space<vmem>>, %arg7: memref<1x1x1xf32, #tpu.memory_space<vmem>>) attributes {dimension_semantics = [#tpu.dimension_semantics<parallel>], iteration_bounds = array<i64: 1>, scalar_prefetch = 0 : i64, scratch_operands = 0 : i64, tpu.core_type = #tpu.core_type<tc>, window_params = [{transform_indices = @transform_0, window_bounds = array<i64: 1, 2, 128>}, {transform_indices = @transform_1, window_bounds = array<i64: 1, 16, 128>}, {transform_indices = @transform_2, window_bounds = array<i64: 1, 16, 128>}, {transform_indices = @transform_3, window_bounds = array<i64: 1, 16, 128>}, {transform_indices = @transform_4, window_bounds = array<i64: 1, 3, 16, 128>}, {transform_indices = @transform_5, window_bounds = array<i64: 1, 1, 1>}, {transform_indices = @transform_6, window_bounds = array<i64: 1, 1, 1>}]} {
    %c0 = arith.constant 0 : index
    %c0_0 = arith.constant 0 : index
    %c0_1 = arith.constant 0 : index
    %0 = vector.load %arg2[%c0, %c0_0, %c0_1] : memref<1x16x128xf32, #tpu.memory_space<vmem>>, vector<1x16x128xf32>
    %c0_2 = arith.constant 0 : index
    %c0_3 = arith.constant 0 : index
    %c0_4 = arith.constant 0 : index
    %1 = vector.load %arg3[%c0_2, %c0_3, %c0_4] : memref<1x16x128xf32, #tpu.memory_space<vmem>>, vector<1x16x128xf32>
    %c0_5 = arith.constant 0 : index
    %c0_6 = arith.constant 0 : index
    %c0_7 = arith.constant 0 : index
    %2 = vector.load %arg4[%c0_5, %c0_6, %c0_7] : memref<1x16x128xf32, #tpu.memory_space<vmem>>, vector<1x16x128xf32>
    %3 = arith.subf %0, %1 : vector<1x16x128xf32>
    %4 = arith.mulf %3, %2 : vector<1x16x128xf32>
    %5 = math.absf %4 : vector<1x16x128xf32>
    %6 = vector.shape_cast %5 : vector<1x16x128xf32> to vector<1x1x16x128xf32>
    %cst = arith.constant dense<0.000000e+00> : vector<1xf32>
    %7 = vector.multi_reduction <add>, %6, %cst [1, 2, 3] : vector<1x1x16x128xf32> to vector<1xf32>
    %8 = vector.shape_cast %7 : vector<1xf32> to vector<1x1x1x1xf32>
    %9 = vector.extract %8[0, 0, 0, 0] : f32 from vector<1x1x1x1xf32>
    %10 = vector.broadcast %9 : f32 to vector<1x1x1xf32>
    %c0_8 = arith.constant 0 : index
    %c0_9 = arith.constant 0 : index
    %c0_10 = arith.constant 0 : index
    %11 = vector.load %arg6[%c0_8, %c0_9, %c0_10] : memref<1x1x1xf32, #tpu.memory_space<vmem>>, vector<1x1x1xf32>
    tpu.vector_store %arg6[%c0_8, %c0_9, %c0_10], %10 {strides = array<i32>} : memref<1x1x1xf32, #tpu.memory_space<vmem>>, vector<1x1x1xf32>,
    %12 = vector.shape_cast %2 : vector<1x16x128xf32> to vector<1x1x16x128xf32>
    %cst_11 = arith.constant dense<0.000000e+00> : vector<1xf32>
    %13 = vector.multi_reduction <add>, %12, %cst_11 [1, 2, 3] : vector<1x1x16x128xf32> to vector<1xf32>
    %14 = vector.shape_cast %13 : vector<1xf32> to vector<1x1x1x1xf32>
    %15 = vector.extract %14[0, 0, 0, 0] : f32 from vector<1x1x1x1xf32>
    %16 = vector.broadcast %15 : f32 to vector<1x1x1xf32>
    %c0_12 = arith.constant 0 : index
    %c0_13 = arith.constant 0 : index
    %c0_14 = arith.constant 0 : index
    %17 = vector.load %arg7[%c0_12, %c0_13, %c0_14] : memref<1x1x1xf32, #tpu.memory_space<vmem>>, vector<1x1x1xf32>
    tpu.vector_store %arg7[%c0_12, %c0_13, %c0_14], %16 {strides = array<i32>} : memref<1x1x1xf32, #tpu.memory_space<vmem>>, vector<1x1x1xf32>,
    %18 = arith.mulf %0, %2 : vector<1x16x128xf32>
    %cst_15 = arith.constant 0.000000e+00 : f32
    %19 = vector.broadcast %cst_15 : f32 to vector<1x16x128xf32>
    %20 = arith.cmpf ogt, %18, %19 : vector<1x16x128xf32>
    %cst_16 = arith.constant 9.99999974E-6 : f32
    %21 = vector.broadcast %cst_16 : f32 to vector<1x16x128xf32>
    %22 = arith.select %20, %18, %21 : vector<1x16x128xi1>, vector<1x16x128xf32>
    %23 = tpu.iota {dimensions = array<i32: 1>} : vector<1x16x128xi32>
    %24 = tpu.iota {dimensions = array<i32: 2>} : vector<1x16x128xi32>
    %c16_i32 = arith.constant 16 : i32
    %c0_i32 = arith.constant 0 : i32
    %25 = arith.cmpi eq, %c16_i32, %c0_i32 : i32
    %c1_i32 = arith.constant 1 : i32
    %26 = arith.select %25, %c1_i32, %c16_i32 : i32
    %27 = vector.broadcast %26 : i32 to vector<1x16x128xi32>
    %28 = arith.remsi %24, %27 : vector<1x16x128xi32>
    %c0_i32_17 = arith.constant 0 : i32
    %29 = vector.broadcast %c0_i32_17 : i32 to vector<1x16x128xi32>
    %30 = arith.cmpi ne, %28, %29 : vector<1x16x128xi32>
    %c0_i32_18 = arith.constant 0 : i32
    %31 = vector.broadcast %c0_i32_18 : i32 to vector<1x16x128xi32>
    %32 = arith.cmpi slt, %28, %31 : vector<1x16x128xi32>
    %c0_i32_19 = arith.constant 0 : i32
    %33 = arith.cmpi slt, %26, %c0_i32_19 : i32
    %34 = vector.broadcast %33 : i1 to vector<1x16x128xi1>
    %35 = vector.broadcast %34 : vector<1x16x128xi1> to vector<1x16x128xi1>
    %36 = arith.xori %32, %35 : vector<1x16x128xi1>
    %37 = arith.andi %36, %30 : vector<1x16x128xi1>
    %38 = vector.broadcast %26 : i32 to vector<1x16x128xi32>
    %39 = arith.addi %28, %38 : vector<1x16x128xi32>
    %40 = arith.select %37, %39, %28 : vector<1x16x128xi1>, vector<1x16x128xi32>
    %c0_i32_20 = arith.constant 0 : i32
    %41 = vector.broadcast %c0_i32_20 : i32 to vector<1x16x128xi32>
    %42 = arith.cmpi eq, %23, %41 : vector<1x16x128xi32>
    %c15_i32 = arith.constant 15 : i32
    %43 = vector.broadcast %c15_i32 : i32 to vector<1x16x128xi32>
    %44 = arith.cmpi eq, %23, %43 : vector<1x16x128xi32>
    %c0_i32_21 = arith.constant 0 : i32
    %45 = vector.broadcast %c0_i32_21 : i32 to vector<1x16x128xi32>
    %46 = arith.cmpi eq, %40, %45 : vector<1x16x128xi32>
    %c15_i32_22 = arith.constant 15 : i32
    %47 = vector.broadcast %c15_i32_22 : i32 to vector<1x16x128xi32>
    %48 = arith.cmpi eq, %40, %47 : vector<1x16x128xi32>
    %c1_i32_23 = arith.constant 1 : i32
    %49 = tpu.dynamic_rotate %22 by %c1_i32_23 dim 1 : vector<1x16x128xf32>, i32 -> vector<1x16x128xf32>
    %cst_24 = arith.constant 0.000000e+00 : f32
    %50 = vector.broadcast %cst_24 : f32 to vector<1x16x128xf32>
    %51 = arith.select %42, %50, %49 : vector<1x16x128xi1>, vector<1x16x128xf32>
    %cst_25 = arith.constant 2.000000e+00 : f32
    %52 = vector.broadcast %cst_25 : f32 to vector<1x16x128xf32>
    %53 = arith.mulf %52, %22 : vector<1x16x128xf32>
    %54 = arith.addf %51, %53 : vector<1x16x128xf32>
    %c15_i32_26 = arith.constant 15 : i32
    %55 = tpu.dynamic_rotate %22 by %c15_i32_26 dim 1 : vector<1x16x128xf32>, i32 -> vector<1x16x128xf32>
    %cst_27 = arith.constant 0.000000e+00 : f32
    %56 = vector.broadcast %cst_27 : f32 to vector<1x16x128xf32>
    %57 = arith.select %44, %56, %55 : vector<1x16x128xi1>, vector<1x16x128xf32>
    %58 = arith.addf %54, %57 : vector<1x16x128xf32>
    %c1_i32_28 = arith.constant 1 : i32
    %59 = tpu.dynamic_rotate %22 by %c1_i32_28 dim 2 : vector<1x16x128xf32>, i32 -> vector<1x16x128xf32>
    %cst_29 = arith.constant 0.000000e+00 : f32
    %60 = vector.broadcast %cst_29 : f32 to vector<1x16x128xf32>
    %61 = arith.select %46, %60, %59 : vector<1x16x128xi1>, vector<1x16x128xf32>
    %cst_30 = arith.constant 2.000000e+00 : f32
    %62 = vector.broadcast %cst_30 : f32 to vector<1x16x128xf32>
    %63 = arith.mulf %62, %22 : vector<1x16x128xf32>
    %64 = arith.addf %61, %63 : vector<1x16x128xf32>
    %c127_i32 = arith.constant 127 : i32
    %65 = tpu.dynamic_rotate %22 by %c127_i32 dim 2 : vector<1x16x128xf32>, i32 -> vector<1x16x128xf32>
    %cst_31 = arith.constant 0.000000e+00 : f32
    %66 = vector.broadcast %cst_31 : f32 to vector<1x16x128xf32>
    %67 = arith.select %48, %66, %65 : vector<1x16x128xi1>, vector<1x16x128xf32>
    %68 = arith.addf %64, %67 : vector<1x16x128xf32>
    %c1_i32_32 = arith.constant 1 : i32
    %69 = tpu.dynamic_rotate %58 by %c1_i32_32 dim 2 : vector<1x16x128xf32>, i32 -> vector<1x16x128xf32>
    %cst_33 = arith.constant 0.000000e+00 : f32
    %70 = vector.broadcast %cst_33 : f32 to vector<1x16x128xf32>
    %71 = arith.select %46, %70, %69 : vector<1x16x128xi1>, vector<1x16x128xf32>
    %c127_i32_34 = arith.constant 127 : i32
    %72 = tpu.dynamic_rotate %58 by %c127_i32_34 dim 2 : vector<1x16x128xf32>, i32 -> vector<1x16x128xf32>
    %cst_35 = arith.constant 0.000000e+00 : f32
    %73 = vector.broadcast %cst_35 : f32 to vector<1x16x128xf32>
    %74 = arith.select %48, %73, %72 : vector<1x16x128xi1>, vector<1x16x128xf32>
    %75 = arith.subf %71, %74 : vector<1x16x128xf32>
    %c1_i32_36 = arith.constant 1 : i32
    %76 = tpu.dynamic_rotate %68 by %c1_i32_36 dim 1 : vector<1x16x128xf32>, i32 -> vector<1x16x128xf32>
    %cst_37 = arith.constant 0.000000e+00 : f32
    %77 = vector.broadcast %cst_37 : f32 to vector<1x16x128xf32>
    %78 = arith.select %42, %77, %76 : vector<1x16x128xi1>, vector<1x16x128xf32>
    %c15_i32_38 = arith.constant 15 : i32
    %79 = tpu.dynamic_rotate %68 by %c15_i32_38 dim 1 : vector<1x16x128xf32>, i32 -> vector<1x16x128xf32>
    %cst_39 = arith.constant 0.000000e+00 : f32
    %80 = vector.broadcast %cst_39 : f32 to vector<1x16x128xf32>
    %81 = arith.select %44, %80, %79 : vector<1x16x128xi1>, vector<1x16x128xf32>
    %82 = arith.subf %78, %81 : vector<1x16x128xf32>
    %c0_40 = arith.constant 0 : index
    %c0_41 = arith.constant 0 : index
    %c0_42 = arith.constant 0 : index
    %83 = vector.load %arg1[%c0_40, %c0_41, %c0_42] : memref<1x2x128xf32, #tpu.memory_space<vmem>>, vector<1x2x128xf32>
    %84 = vector.extract_strided_slice %83 {offsets = [0, 0, 0], sizes = [1, 1, 128], strides = [1, 1, 1]} : vector<1x2x128xf32> to vector<1x1x128xf32>
    %85 = vector.extract_strided_slice %83 {offsets = [0, 1, 0], sizes = [1, 1, 128], strides = [1, 1, 1]} : vector<1x2x128xf32> to vector<1x1x128xf32>
    %86 = tpu.reciprocal %22 {approx = true} : vector<1x16x128xf32> -> vector<1x16x128xf32>
    %87 = vector.broadcast %84 : vector<1x1x128xf32> to vector<1x16x128xf32>
    %88 = arith.mulf %75, %87 : vector<1x16x128xf32>
    %89 = arith.mulf %88, %86 : vector<1x16x128xf32>
    %90 = vector.broadcast %85 : vector<1x1x128xf32> to vector<1x16x128xf32>
    %91 = arith.mulf %82, %90 : vector<1x16x128xf32>
    %92 = arith.mulf %91, %86 : vector<1x16x128xf32>
    %cst_43 = arith.constant 0.000000e+00 : f32
    %93 = vector.broadcast %cst_43 : f32 to vector<1x16x128xf32>
    %94 = arith.cmpf oeq, %89, %93 : vector<1x16x128xf32>
    %cst_44 = arith.constant 9.99999974E-6 : f32
    %95 = vector.broadcast %cst_44 : f32 to vector<1x16x128xf32>
    %96 = arith.select %94, %95, %89 : vector<1x16x128xi1>, vector<1x16x128xf32>
    %cst_45 = arith.constant 0.000000e+00 : f32
    %97 = vector.broadcast %cst_45 : f32 to vector<1x16x128xf32>
    %98 = arith.cmpf oeq, %92, %97 : vector<1x16x128xf32>
    %cst_46 = arith.constant 9.99999974E-6 : f32
    %99 = vector.broadcast %cst_46 : f32 to vector<1x16x128xf32>
    %100 = arith.select %98, %99, %92 : vector<1x16x128xi1>, vector<1x16x128xf32>
    %101 = arith.mulf %96, %96 : vector<1x16x128xf32>
    %102 = arith.mulf %100, %100 : vector<1x16x128xf32>
    %103 = arith.addf %101, %102 : vector<1x16x128xf32>
    %cst_47 = arith.constant 1.000000e+00 : f32
    %104 = vector.broadcast %cst_47 : f32 to vector<1x16x128xf32>
    %105 = arith.addf %103, %104 : vector<1x16x128xf32>
    %106 = math.rsqrt %105 : vector<1x16x128xf32>
    %107 = arith.mulf %96, %106 : vector<1x16x128xf32>
    %c0_48 = arith.constant 0 : index
    %c0_49 = arith.constant 0 : index
    %c0_50 = arith.constant 0 : index
    %c0_51 = arith.constant 0 : index
    %108 = vector.load %arg5[%c0_48, %c0_49, %c0_50, %c0_51] : memref<1x3x16x128xf32, #tpu.memory_space<vmem>>, vector<1x1x16x128xf32>
    %109 = vector.shape_cast %108 : vector<1x1x16x128xf32> to vector<1x16x128xf32>
    %110 = vector.shape_cast %107 : vector<1x16x128xf32> to vector<1x1x16x128xf32>
    tpu.vector_store %arg5[%c0_48, %c0_49, %c0_50, %c0_51], %110 {strides = array<i32>} : memref<1x3x16x128xf32, #tpu.memory_space<vmem>>, vector<1x1x16x128xf32>,
    %111 = arith.mulf %100, %106 : vector<1x16x128xf32>
    %c0_52 = arith.constant 0 : index
    %c1 = arith.constant 1 : index
    %c0_53 = arith.constant 0 : index
    %c0_54 = arith.constant 0 : index
    %112 = vector.load %arg5[%c0_52, %c1, %c0_53, %c0_54] : memref<1x3x16x128xf32, #tpu.memory_space<vmem>>, vector<1x1x16x128xf32>
    %113 = vector.shape_cast %112 : vector<1x1x16x128xf32> to vector<1x16x128xf32>
    %114 = vector.shape_cast %111 : vector<1x16x128xf32> to vector<1x1x16x128xf32>
    tpu.vector_store %arg5[%c0_52, %c1, %c0_53, %c0_54], %114 {strides = array<i32>} : memref<1x3x16x128xf32, #tpu.memory_space<vmem>>, vector<1x1x16x128xf32>,
    %c0_55 = arith.constant 0 : index
    %c2 = arith.constant 2 : index
    %c0_56 = arith.constant 0 : index
    %c0_57 = arith.constant 0 : index
    %115 = vector.load %arg5[%c0_55, %c2, %c0_56, %c0_57] : memref<1x3x16x128xf32, #tpu.memory_space<vmem>>, vector<1x1x16x128xf32>
    %116 = vector.shape_cast %115 : vector<1x1x16x128xf32> to vector<1x16x128xf32>
    %117 = vector.shape_cast %106 : vector<1x16x128xf32> to vector<1x1x16x128xf32>
    tpu.vector_store %arg5[%c0_55, %c2, %c0_56, %c0_57], %117 {strides = array<i32>} : memref<1x3x16x128xf32, #tpu.memory_space<vmem>>, vector<1x1x16x128xf32>,
    return
  }
  func.func @transform_0(%arg0: i32) -> (i32, i32, i32) {
    %c0_i32 = arith.constant 0 : i32
    %c0_i32_0 = arith.constant 0 : i32
    %c0_i32_1 = arith.constant 0 : i32
    return %arg0, %c0_i32, %c0_i32_0 : i32, i32, i32
  }
  func.func @transform_1(%arg0: i32) -> (i32, i32, i32) {
    %c0_i32 = arith.constant 0 : i32
    %c0_i32_0 = arith.constant 0 : i32
    %c0_i32_1 = arith.constant 0 : i32
    return %arg0, %c0_i32, %c0_i32_0 : i32, i32, i32
  }
  func.func @transform_2(%arg0: i32) -> (i32, i32, i32) {
    %c0_i32 = arith.constant 0 : i32
    %c0_i32_0 = arith.constant 0 : i32
    %c0_i32_1 = arith.constant 0 : i32
    return %arg0, %c0_i32, %c0_i32_0 : i32, i32, i32
  }
  func.func @transform_3(%arg0: i32) -> (i32, i32, i32) {
    %c0_i32 = arith.constant 0 : i32
    %c0_i32_0 = arith.constant 0 : i32
    %c0_i32_1 = arith.constant 0 : i32
    return %arg0, %c0_i32, %c0_i32_0 : i32, i32, i32
  }
  func.func @transform_4(%arg0: i32) -> (i32, i32, i32, i32) {
    %c0_i32 = arith.constant 0 : i32
    %c0_i32_0 = arith.constant 0 : i32
    %c0_i32_1 = arith.constant 0 : i32
    %c0_i32_2 = arith.constant 0 : i32
    return %arg0, %c0_i32, %c0_i32_0, %c0_i32_1 : i32, i32, i32, i32
  }
  func.func @transform_5(%arg0: i32) -> (i32, i32, i32) {
    %c0_i32 = arith.constant 0 : i32
    %c0_i32_0 = arith.constant 0 : i32
    %c0_i32_1 = arith.constant 0 : i32
    return %arg0, %c0_i32, %c0_i32_0 : i32, i32, i32
  }
  func.func @transform_6(%arg0: i32) -> (i32, i32, i32) {
    %c0_i32 = arith.constant 0 : i32
    %c0_i32_0 = arith.constant 0 : i32
    %c0_i32_1 = arith.constant 0 : i32
    return %arg0, %c0_i32, %c0_i32_0 : i32, i32, i32
  }
}

</mosaic_0001>

<llo_original>
// kernel: tpu_custom_call.1
$region0: #{tpu_custom_call.1}
  #allocation0 [shape = 'u32[]', space=smem, size = 0x4, offset = 0x4, fixed_abs, tag = 'smem constant byte address 0x4 - core index']
  #allocation1 [shape = 'u32[72,128]{1,0:T(1,128)}', space=vmem, size = 0x9000, scoped, tag = 'internal scratch']
  %s0 = inlined_call_operand.hbm [shape: f32[1,2,128], index: 0, kind: input, shape index: {}]
  %s1 = inlined_call_operand.hbm [shape: f32[1,16,128], index: 1, kind: input, shape index: {}]
  %s2 = inlined_call_operand.hbm [shape: f32[1,16,128], index: 2, kind: input, shape index: {}]
  %s3 = inlined_call_operand.hbm [shape: f32[1,16,128], index: 3, kind: input, shape index: {}]
  %s4 = inlined_call_operand.hbm [shape: f32[1,3,16,128], index: 4, kind: output, shape index: {0}]
  %s5 = inlined_call_operand.hbm [shape: f32[1,1,1], index: 5, kind: output, shape index: {1}]
  %s6 = inlined_call_operand.hbm [shape: f32[1,1,1], index: 6, kind: output, shape index: {2}]
  %7 = xla_tuple %s4, %s5, %s6
  %s8 = sld [smem:[#allocation0]]
  $region58: #{tpu_custom_call.1} parent=0
    _
  %s10 = ssub.s32 1, %s8
  %s11 = scalar_select 0, %s10, %s8
  $region1: #{tpu_custom_call.1} parent=0
    #allocation2 [shape = 'u8[1024]{0}', space=vmem, size = 0x400, scoped, tag = 'input window, operand 0, single buffered']
    #allocation3 [shape = 's32[1]{0}', space=sflag, size = 0x4, scoped, tag = 'scoped memory for tpu_custom_call.1']
    #allocation4 [shape = 's32[1]{0}', space=sflag, size = 0x4, scoped, tag = 'scoped memory for tpu_custom_call.1']
    #allocation5 [shape = 'u8[8192]{0}', space=vmem, size = 0x2000, scoped, tag = 'input window, operand 1, single buffered']
    #allocation6 [shape = 's32[1]{0}', space=sflag, size = 0x4, scoped, tag = 'scoped memory for tpu_custom_call.1']
    #allocation7 [shape = 'u8[8192]{0}', space=vmem, size = 0x2000, scoped, tag = 'input window, operand 2, single buffered']
    #allocation8 [shape = 'u8[8192]{0}', space=vmem, size = 0x2000, scoped, tag = 'input window, operand 3, single buffered']
    #allocation9 [shape = 's32[1]{0}', space=sflag, size = 0x4, scoped, tag = 'scoped memory for tpu_custom_call.1']
    #allocation10 [shape = 'u8[24576]{0}', space=vmem, size = 0x6000, scoped, tag = 'output window, operand 0, single buffered']
    #allocation11 [shape = 'u8[512]{0}', space=vmem, size = 0x400, scoped, tag = 'output window, operand 1, single buffered']
    #allocation12 [shape = 's32[1]{0}', space=sflag, size = 0x4, scoped, tag = 'scoped memory for tpu_custom_call.1']
    #allocation13 [shape = 'u8[512]{0}', space=vmem, size = 0x400, scoped, tag = 'output window, operand 2, single buffered']
    %12 = vsyncpa [#allocation3], 0
    %13 = vsyncpa [#allocation6], 0
    %14 = vsyncpa [#allocation9], 0
    %15 = vsyncpa [#allocation4], 0
    %16 = vsyncpa [#allocation12], 0
    // Predicated region
    $region2: #{tpu_custom_call.1} parent=1 // pred_check
      _
    $region3: #{tpu_custom_call.1} parent=1 // pred_check_branch
      %18 = sbr.rel (0) target = $region5
    $region4: #{tpu_custom_call.1} parent=1 // pred_region
      %20 = vsyncadd [#allocation3], 0
      %s22 = sshll.u32 %s0, 4
      %s23 = int_to_ptr.hbm [resolvable:$true] %s22
      %s24 = sshll.u32 [#allocation2], 4
      %s25 = int_to_ptr.vmem [resolvable:$true] %s24
      %27 = dma.hbm_to_vmem [thread:$0]  %s23, 32, %s25, [#allocation3]
    $region5: #{tpu_custom_call.1} parent=1 // pred_fallthru
      _
    // Predicated region
    $region6: #{tpu_custom_call.1} parent=1 // pred_check
      _
    $region7: #{tpu_custom_call.1} parent=1 // pred_check_branch
      %29 = sbr.rel (0) target = $region9
    $region8: #{tpu_custom_call.1} parent=1 // pred_region
      %31 = vsyncadd [#allocation6], 0
      %s32 = sshll.u32 %s1, 4
      %s33 = int_to_ptr.hbm [resolvable:$true] %s32
      %s34 = sshll.u32 [#allocation5], 4
      %s35 = int_to_ptr.vmem [resolvable:$true] %s34
      %40 = dma.hbm_to_vmem [thread:$0]  %s33, 256, %s35, [#allocation6], 128, 128, 8
    $region9: #{tpu_custom_call.1} parent=1 // pred_fallthru
      _
    // Predicated region
    $region10: #{tpu_custom_call.1} parent=1 // pred_check
      _
    $region11: #{tpu_custom_call.1} parent=1 // pred_check_branch
      %42 = sbr.rel (0) target = $region13
    $region12: #{tpu_custom_call.1} parent=1 // pred_region
      %44 = vsyncadd [#allocation6], 0
      %s45 = sshll.u32 %s2, 4
      %s46 = int_to_ptr.hbm [resolvable:$true] %s45
      %s47 = sshll.u32 [#allocation7], 4
      %s48 = int_to_ptr.vmem [resolvable:$true] %s47
      %53 = dma.hbm_to_vmem [thread:$0]  %s46, 256, %s48, [#allocation6], 128, 128, 8
    $region13: #{tpu_custom_call.1} parent=1 // pred_fallthru
      _
    // Predicated region
    $region14: #{tpu_custom_call.1} parent=1 // pred_check
      _
    $region15: #{tpu_custom_call.1} parent=1 // pred_check_branch
      %55 = sbr.rel (0) target = $region17
    $region16: #{tpu_custom_call.1} parent=1 // pred_region
      %57 = vsyncadd [#allocation9], 0
      %s58 = sshll.u32 %s3, 4
      %s59 = int_to_ptr.hbm [resolvable:$true] %s58
      %s60 = sshll.u32 [#allocation8], 4
      %s61 = int_to_ptr.vmem [resolvable:$true] %s60
      %66 = dma.hbm_to_vmem [thread:$0]  %s59, 256, %s61, [#allocation9], 128, 128, 8
    $region17: #{tpu_custom_call.1} parent=1 // pred_fallthru
      _
    // Predicated region
    $region18: #{tpu_custom_call.1} parent=1 // pred_check
      _
    $region19: #{tpu_custom_call.1} parent=1 // pred_check_branch
      %68 = sbr.rel (0) target = $region21
    $region20: #{tpu_custom_call.1} parent=1 // pred_region
      %70 = dma.done [#allocation3], 32
    $region21: #{tpu_custom_call.1} parent=1 // pred_fallthru
      _
    // Predicated region
    $region22: #{tpu_custom_call.1} parent=1 // pred_check
      _
    $region23: #{tpu_custom_call.1} parent=1 // pred_check_branch
      %72 = sbr.rel (0) target = $region25
    $region24: #{tpu_custom_call.1} parent=1 // pred_region
      %74 = dma.done [#allocation6], 256
    $region25: #{tpu_custom_call.1} parent=1 // pred_fallthru
      _
    // Predicated region
    $region26: #{tpu_custom_call.1} parent=1 // pred_check
      _
    $region27: #{tpu_custom_call.1} parent=1 // pred_check_branch
      %76 = sbr.rel (0) target = $region29
    $region28: #{tpu_custom_call.1} parent=1 // pred_region
      %78 = dma.done [#allocation6], 256
    $region29: #{tpu_custom_call.1} parent=1 // pred_fallthru
      _
    // Predicated region
    $region30: #{tpu_custom_call.1} parent=1 // pred_check
      _
    $region31: #{tpu_custom_call.1} parent=1 // pred_check_branch
      %80 = sbr.rel (0) target = $region33
    $region32: #{tpu_custom_call.1} parent=1 // pred_region
      %82 = dma.done [#allocation9], 256
    $region33: #{tpu_custom_call.1} parent=1 // pred_fallthru
      _
    %v83 = vld [vmem:[#allocation5] sm:$0xff]
    %v84 = vld [vmem:[#allocation5 + $0x8] sm:$0xff]
    %v85 = vld [vmem:[#allocation7] sm:$0xff]
    %v86 = vld [vmem:[#allocation7 + $0x8] sm:$0xff]
    %v87 = vld [vmem:[#allocation8] sm:$0xff]
    %v88 = vld [vmem:[#allocation8 + $0x8] sm:$0xff]
    %v89 = vsub.f32 %v83, %v85
    %v90 = vsub.f32 %v84, %v86
    %v91 = vmul.f32 %v89, %v87
    %v92 = vmul.f32 %v90, %v88
    %v93 = vand.u32 2147483647, %v91
    %v94 = vand.u32 2147483647, %v92
    %v95 = vadd.f32 %v93, %v94
    %96 = vadd.xlane.f32.xlu0 %v95
    %v97 = vpop.xlane.xlu0 %96
    %v98 = vrot.slane %v97, 4
    %v99 = vadd.f32 %v97, %v98
    %v100 = vrot.slane %v99, 2
    %v101 = vadd.f32 %v99, %v100
    %v102 = vrot.slane %v101, 1
    %v103 = vadd.f32 %v101, %v102
    %s104 = vtos %v103
    %v105 = vstv %s104
    %vm106 = vcmask 0
    %107 = vst.msk [vmem:[#allocation11] sm:$0x1] %vm106, %v105
    %v108 = vadd.f32 %v87, %v88
    %109 = vadd.xlane.f32.xlu0 %v108
    %v110 = vpop.xlane.xlu0 %109
    %v111 = vrot.slane %v110, 4
    %v112 = vadd.f32 %v110, %v111
    %v113 = vrot.slane %v112, 2
    %v114 = vadd.f32 %v112, %v113
    %v115 = vrot.slane %v114, 1
    %v116 = vadd.f32 %v114, %v115
    %s117 = vtos %v116
    %v118 = vstv %s117
    %119 = vst.msk [vmem:[#allocation13] sm:$0x1] %vm106, %v118
    %v120 = vmul.f32 %v83, %v87
    %v121 = vmul.f32 %v84, %v88
    %vm122 = vcmp.gt.f32.partialorder %v120, 0.0
    %vm123 = vcmp.gt.f32.partialorder %v121, 0.0
    %v124 = vsel %vm122, %v120, 1e-05
    %v125 = vsel %vm123, %v121, 1e-05
    %v126 = vlaneseq
    %v127 = vshrl.u32 %v126, 7
    %v128 = vadd.s32 %v127, 8
    %v129 = vlaneseq
    %v130 = vand.u32 %v129, 127
    %vm131 = vcmp.lt.s32.totalorder %v130, 0
    %v132 = vsub.s32 0, %v130
    %v133 = vsel %vm131, %v132, %v130
    %v134 = vshrl.u32 %v133, 4
    %v135 = vand.u32 %v133, 15
    %v136 = vsub.s32 0, %v135
    %v137 = vsel %vm131, %v136, %v135
    %vm138 = vcmp.ne.s32.totalorder %v137, 0
    %vm139 = vcmp.lt.s32.totalorder %v137, 0
    %vm140 = vmand %vm139, %vm138
    %v141 = vadd.s32 %v137, 16
    %v142 = vsel %vm140, %v141, %v137
    %vm143 = vcmp.eq.s32.totalorder %v127, 0
    %vm144 = vcmp.eq.s32.totalorder %v128, 0
    %vm145 = vcmp.eq.s32.totalorder %v127, 15
    %vm146 = vcmp.eq.s32.totalorder %v128, 15
    %vm147 = vcmp.eq.s32.totalorder %v142, 0
    %vm148 = vcmp.eq.s32.totalorder %v142, 15
    %v149 = vrot.slane %v124, 7
    %v150 = vrot.slane %v125, 7
    %vm151 = vcmp.lt.s32.totalorder %v127, 1
    %v152 = vsel %vm151, %v149, %v150
    %v153 = vsel %vm151, %v150, %v149
    %v154 = vsel %vm143, 0.0, %v153
    %v155 = vsel %vm144, 0.0, %v152
    %v156 = vmul.f32 %v124, 2.0
    %v157 = vmul.f32 %v125, 2.0
    %v158 = vadd.f32 %v154, %v156
    %v159 = vadd.f32 %v155, %v157
    %v160 = vrot.slane %v124, 1
    %v161 = vrot.slane %v125, 1
    %vm162 = vcmp.lt.s32.totalorder %v127, 7
    %v163 = vsel %vm162, %v160, %v161
    %v164 = vsel %vm162, %v161, %v160
    %v165 = vsel %vm145, 0.0, %v163
    %v166 = vsel %vm146, 0.0, %v164
    %v167 = vadd.f32 %v158, %v165
    %v168 = vadd.f32 %v159, %v166
    %169 = vrot.lane.b32.xlu0 %v124, 1
    %v170 = vpop.permute.xlu0 %169
    %171 = vrot.lane.b32.xlu0 %v125, 1
    %v172 = vpop.permute.xlu0 %171
    %v173 = vsel %vm147, 0.0, %v170
    %v174 = vsel %vm147, 0.0, %v172
    %v175 = vadd.f32 %v173, %v156
    %v176 = vadd.f32 %v174, %v157
    %177 = vrot.lane.b32.xlu0 %v124, 127
    %v178 = vpop.permute.xlu0 %177
    %179 = vrot.lane.b32.xlu0 %v125, 127
    %v180 = vpop.permute.xlu0 %179
    %v181 = vsel %vm148, 0.0, %v178
    %v182 = vsel %vm148, 0.0, %v180
    %v183 = vadd.f32 %v175, %v181
    %v184 = vadd.f32 %v176, %v182
    %185 = vrot.lane.b32.xlu0 %v167, 1
    %v186 = vpop.permute.xlu0 %185
    %187 = vrot.lane.b32.xlu0 %v168, 1
    %v188 = vpop.permute.xlu0 %187
    %v189 = vsel %vm147, 0.0, %v186
    %v190 = vsel %vm147, 0.0, %v188
    %191 = vrot.lane.b32.xlu0 %v167, 127
    %v192 = vpop.permute.xlu0 %191
    %193 = vrot.lane.b32.xlu0 %v168, 127
    %v194 = vpop.permute.xlu0 %193
    %v195 = vsel %vm148, 0.0, %v192
    %v196 = vsel %vm148, 0.0, %v194
    %v197 = vsub.f32 %v189, %v195
    %v198 = vsub.f32 %v190, %v196
    %v199 = vrot.slane %v183, 7
    %v200 = vrot.slane %v184, 7
    %v201 = vsel %vm151, %v199, %v200
    %v202 = vsel %vm151, %v200, %v199
    %v203 = vsel %vm143, 0.0, %v202
    %v204 = vsel %vm144, 0.0, %v201
    %v205 = vrot.slane %v183, 1
    %v206 = vrot.slane %v184, 1
    %v207 = vsel %vm162, %v205, %v206
    %v208 = vsel %vm162, %v206, %v205
    %v209 = vsel %vm145, 0.0, %v207
    %v210 = vsel %vm146, 0.0, %v208
    %v211 = vsub.f32 %v203, %v209
    %v212 = vsub.f32 %v204, %v210
    %v213 = vld [vmem:[#allocation2] sm:$0x3]
    %v214 = vrcp.pop %v124
    %v215 = vrcp.pop %v125
    %v216 = vperm.slane %v213, 0
    %v217 = vmul.f32 %v197, %v216
    %v218 = vmul.f32 %v198, %v216
    %v219 = vmul.f32 %v217, %v214
    %v220 = vmul.f32 %v218, %v215
    %v221 = vperm.slane %v213, 1
    %v222 = vmul.f32 %v211, %v221
    %v223 = vmul.f32 %v212, %v221
    %v224 = vmul.f32 %v222, %v214
    %v225 = vmul.f32 %v223, %v215
    %vm226 = vcmp.eq.f32.partialorder %v219, 0.0
    %vm227 = vcmp.eq.f32.partialorder %v220, 0.0
    %v228 = vsel %vm226, 1e-05, %v219
    %v229 = vsel %vm227, 1e-05, %v220
    %vm230 = vcmp.eq.f32.partialorder %v224, 0.0
    %vm231 = vcmp.eq.f32.partialorder %v225, 0.0
    %v232 = vsel %vm230, 1e-05, %v224
    %v233 = vsel %vm231, 1e-05, %v225
    %v234 = vmul.f32 %v228, %v228
    %v235 = vmul.f32 %v229, %v229
    %v236 = vmul.f32 %v232, %v232
    %v237 = vmul.f32 %v233, %v233
    %v238 = vadd.f32 %v234, %v236
    %v239 = vadd.f32 %v235, %v237
    %v240 = vadd.f32 %v238, 1.0
    %v241 = vadd.f32 %v239, 1.0
    %v242 = vrsqrt.pop %v240
    %v243 = vmul.f32 %v242, %v240
    %v244 = vmul.f32 %v243, %v242
    %v245 = vmul.f32 0.5, %v244
    %v246 = vsub.f32 1.5, %v245
    %v247 = vmul.f32 %v242, %v246
    %vm248 = vweird.f32 %v240
    %vm249 = vweird.f32 %v242
    %vm250 = vmor %vm248, %vm249
    %v251 = vsel %vm250, %v242, %v247
    %v252 = vrsqrt.pop %v241
    %v253 = vmul.f32 %v252, %v241
    %v254 = vmul.f32 %v253, %v252
    %v255 = vmul.f32 0.5, %v254
    %v256 = vsub.f32 1.5, %v255
    %v257 = vmul.f32 %v252, %v256
    %vm258 = vweird.f32 %v241
    %vm259 = vweird.f32 %v252
    %vm260 = vmor %vm258, %vm259
    %v261 = vsel %vm260, %v252, %v257
    %v262 = vmul.f32 %v228, %v251
    %v263 = vmul.f32 %v229, %v261
    %264 = vst [vmem:[#allocation10] sm:$0xff] %v262
    %265 = vst [vmem:[#allocation10 + $0x8] sm:$0xff] %v263
    %v266 = vmul.f32 %v232, %v251
    %v267 = vmul.f32 %v233, %v261
    %s268 = scalar_lea.vmem [#allocation10], 16
    %269 = vst [vmem:[%s268] sm:$0xff] %v266
    %270 = vst [vmem:[%s268 + $0x8] sm:$0xff] %v267
    %s271 = scalar_lea.vmem [#allocation10], 32
    %272 = vst [vmem:[%s271] sm:$0xff] %v251
    %273 = vst [vmem:[%s271 + $0x8] sm:$0xff] %v261
    // Predicated region
    $region34: #{tpu_custom_call.1} parent=1 // pred_check
      _
    $region35: #{tpu_custom_call.1} parent=1 // pred_check_branch
      %275 = sbr.rel (0) target = $region37
    $region36: #{tpu_custom_call.1} parent=1 // pred_region
      %277 = vsyncadd [#allocation4], 0
      %s278 = sshll.u32 [#allocation10], 4
      %s279 = int_to_ptr.vmem [resolvable:$true] %s278
      %s280 = sshll.u32 %s4, 4
      %s281 = int_to_ptr.hbm [resolvable:$true] %s280
      %286 = dma.vmem_to_hbm [thread:$0]  %s279, 768, %s281, [#allocation4], 128, 128, 8
    $region37: #{tpu_custom_call.1} parent=1 // pred_fallthru
      _
    // Predicated region
    $region38: #{tpu_custom_call.1} parent=1 // pred_check
      _
    $region39: #{tpu_custom_call.1} parent=1 // pred_check_branch
      %288 = sbr.rel (0) target = $region41
    $region40: #{tpu_custom_call.1} parent=1 // pred_region
      %290 = vsyncadd [#allocation12], 0
      %s292 = sshll.u32 [#allocation11], 4
      %s293 = int_to_ptr.vmem [resolvable:$true] %s292
      %s294 = sshll.u32 %s5, 4
      %s295 = int_to_ptr.hbm [resolvable:$true] %s294
      %297 = dma.vmem_to_hbm [thread:$0]  %s293, 16, %s295, [#allocation12]
    $region41: #{tpu_custom_call.1} parent=1 // pred_fallthru
      _
    // Predicated region
    $region42: #{tpu_custom_call.1} parent=1 // pred_check
      _
    $region43: #{tpu_custom_call.1} parent=1 // pred_check_branch
      %299 = sbr.rel (0) target = $region45
    $region44: #{tpu_custom_call.1} parent=1 // pred_region
      %301 = vsyncadd [#allocation12], 0
      %s303 = sshll.u32 [#allocation13], 4
      %s304 = int_to_ptr.vmem [resolvable:$true] %s303
      %s305 = sshll.u32 %s6, 4
      %s306 = int_to_ptr.hbm [resolvable:$true] %s305
      %308 = dma.vmem_to_hbm [thread:$0]  %s304, 16, %s306, [#allocation12]
    $region45: #{tpu_custom_call.1} parent=1 // pred_fallthru
      _
    // Predicated region
    $region46: #{tpu_custom_call.1} parent=1 // pred_check
      _
    $region47: #{tpu_custom_call.1} parent=1 // pred_check_branch
      %310 = sbr.rel (0) target = $region49
    $region48: #{tpu_custom_call.1} parent=1 // pred_region
      %312 = dma.done [#allocation4], 768
    $region49: #{tpu_custom_call.1} parent=1 // pred_fallthru
      _
    // Predicated region
    $region50: #{tpu_custom_call.1} parent=1 // pred_check
      _
    $region51: #{tpu_custom_call.1} parent=1 // pred_check_branch
      %314 = sbr.rel (0) target = $region53
    $region52: #{tpu_custom_call.1} parent=1 // pred_region
      %316 = dma.done [#allocation12], 16
    $region53: #{tpu_custom_call.1} parent=1 // pred_fallthru
      _
    // Predicated region
    $region54: #{tpu_custom_call.1} parent=1 // pred_check
      _
    $region55: #{tpu_custom_call.1} parent=1 // pred_check_branch
      %318 = sbr.rel (0) target = $region57
    $region56: #{tpu_custom_call.1} parent=1 // pred_region
      %320 = dma.done [#allocation12], 16
    $region57: #{tpu_custom_call.1} parent=1 // pred_fallthru
      _
    %321 = vsyncpa [#allocation3], 1
    %322 = vsyncpa [#allocation6], 1
    %323 = vsyncpa [#allocation9], 1
    %324 = vsyncpa [#allocation4], 1
    %325 = vsyncpa [#allocation12], 1

</llo_original>
